<compile_context>
chip_gen: v5e
topology: v5e:2x2
jax: 0.10.0
libtpu: 0.0.40
codegen_flags: <defaults>
</compile_context>

<pallas_src>
import jax
import jax.numpy as jnp
from jax import lax
from jax.experimental import pallas as pl
from jax.experimental.pallas import tpu as pltpu


def _make_kernel(cdt, edt, approx_recip, c2):
    """Build the attention kernel closed over compute/exp dtypes."""

    def kernel(gamma_ref, x_ref, key_ref, kb_ref, g_ref, wo_ref, bo_ref, out_ref):
        x_orig = x_ref[0]                              # (C, TQ) original dtype
        x_c = x_orig.astype(cdt)                       # MXU operand dtype

        # scores over pooled keys, transposed: keys on sublanes, queries on lanes
        s = jnp.dot(key_ref[0], x_c,
                    preferred_element_type=jnp.float32)            # (HW4, TQ)
        s = s + kb_ref[0]                                          # + b_t · phi^T
        s = s - jnp.max(s, axis=0, keepdims=True)
        e = jnp.exp(s.astype(edt)).astype(cdt)         # EUP exp (bf16 on v6e/v7x)

        # value matmul with fused denominator: last row of g_ref is all-ones,
        # so row c2 of o_ext is the softmax row-sum for every query.
        o_ext = jnp.dot(g_ref[0], e,
                        preferred_element_type=jnp.float32)        # (C2+1, TQ)
        o = o_ext[:c2] * pl.reciprocal(o_ext[c2:c2 + 1], approx=approx_recip)

        # output projection + residual (residual kept in original precision)
        y = jnp.dot(wo_ref[...], o.astype(cdt),
                    preferred_element_type=jnp.float32) + bo_ref[...]   # (C, TQ)
        y = gamma_ref[0, 0] * y + x_orig.astype(jnp.float32)
        out_ref[0] = y.astype(out_ref.dtype)           # lane-dense (C, TQ) store

    return kernel


def _pick_block_q(hw, hw4, vmem_cap):
    """Largest power-of-two multiple of 128 dividing hw whose f32 (hw4, bq)
    score tile stays under a generation-aware cap (tight on 64 MiB v7x,
    relaxed on 128 MiB v5e/v6e)."""
    if hw % 128 != 0:
        # TODO(synk): sub-128 query extent falls back to one masked-store tile.
        return hw
    score_cap = (2 if vmem_cap <= 64 * 2**20 else 6) * 2**20
    bq = 128
    while hw % (2 * bq) == 0 and 2 * bq * hw4 * 4 <= score_cap:
        bq *= 2
    return bq


def self_attention_pallas(x_nchw, params, *, block_q=None,
                          compute_dtype=jnp.float32, bf16_exp=None,
                          approx_recip=True):
    """SelfAttention forward.

    approx_recip: use the EUP approximate reciprocal for the softmax
      normalization (~1e-3 rel error on the attention branch); set False for
      exact division.
    bf16_exp: compute exp in bf16 (v6e/v7x EUP); defaults to following
      compute_dtype.  Pass False on v5e (no bf16 EUP/VPU).
    """
    w_t, b_t, w_p, b_p, w_g, b_g, w_o, b_o, gamma = params
    B, C, H, W = x_nchw.shape
    assert C % 8 == 0 and H % 2 == 0 and W % 2 == 0
    HW, HW4 = H * W, (H * W) // 4
    C8, C2 = C // 8, C // 2
    Cpg = C8 + C2

    cdt = jnp.dtype(compute_dtype)
    if bf16_exp is None:
        bf16_exp = (cdt == jnp.bfloat16)
    edt = jnp.bfloat16 if bf16_exp else jnp.float32
    out_dtype = x_nchw.dtype
    x_isz = jnp.dtype(x_nchw.dtype).itemsize
    o_isz = jnp.dtype(out_dtype).itemsize
    c_isz = cdt.itemsize

    try:
        vmem_cap = int(getattr(pltpu.get_tpu_info(), "vmem_capacity_bytes",
                               64 * 2**20))
    except Exception:
        vmem_cap = 64 * 2**20

    if block_q is None:
        block_q = _pick_block_q(HW, HW4, vmem_cap)
    assert HW % block_q == 0
    n_q = HW // block_q

    # ---- XLA prologue (small): pooled phi/g features + theta fold ----------
    xf = x_nchw.astype(jnp.float32)
    w_pg = jnp.concatenate([w_p, w_g], axis=1)                    # (C, Cpg)
    b_pg = jnp.concatenate([b_p, b_g])                            # (Cpg,)
    feat = jnp.einsum('bchw,cd->bhwd', xf, w_pg) + b_pg           # (B,H,W,Cpg)
    pooled = (feat.reshape(B, H // 2, 2, W // 2, 2, Cpg)
              .max(axis=(2, 4)).reshape(B, HW4, Cpg))             # (B,HW4,Cpg)
    phi = pooled[..., :C8]                                        # (B,HW4,C8)
    gT = jnp.swapaxes(pooled[..., C8:], 1, 2)                     # (B,C2,HW4)
    # fold w_theta / b_theta into the pooled keys:
    #   s[q,k] = theta[q]·phi[k] = x[q]·(w_t φᵀ) + b_t·φᵀ
    keyT = jnp.einsum('bnk,ck->bnc', phi, w_t)                    # (B,HW4,C)
    kbias = jnp.einsum('bnk,k->bn', phi, b_t).reshape(B, HW4, 1)  # (B,HW4,1)
    g_ext = jnp.concatenate(
        [gT, jnp.ones((B, 1, HW4), gT.dtype)], axis=1)            # (B,C2+1,HW4)

    x_flat = x_nchw.reshape(B, C, HW)                             # free reshape

    # VMEM estimate: per-step blocks (double-buffered) + live score tile.
    est = (2 * C * block_q * (x_isz + o_isz)
           + 2 * (HW4 * C + (C2 + 1) * HW4 + C * C2) * c_isz
           + 2 * (HW4 + C) * 4
           + 4 * block_q * HW4 * 4)
    vmem_limit = int(min(int(0.8 * vmem_cap), max(32 * 2**20, 4 * est)))

    cost = pl.CostEstimate(
        flops=int(2 * B * HW * HW4 * (C + C2 + 1) + 2 * B * HW * C2 * C),
        transcendentals=int(B * HW * HW4),
        bytes_accessed=int(B * HW * C * (x_isz + o_isz)
                           + B * HW4 * (C + C2 + 2) * c_isz + B * HW4 * 4),
    )

    kernel = _make_kernel(cdt, edt, approx_recip, C2)

    out_flat = pl.pallas_call(
        kernel,
        out_shape=jax.ShapeDtypeStruct((B, C, HW), out_dtype),
        grid_spec=pltpu.PrefetchScalarGridSpec(
            num_scalar_prefetch=0,
            grid=(B, n_q),
            in_specs=[
                pl.BlockSpec(memory_space=pltpu.MemorySpace.SMEM),        # gamma
                pl.BlockSpec((1, C, block_q), lambda b, q: (b, 0, q)),    # x tile
                pl.BlockSpec((1, HW4, C), lambda b, q: (b, 0, 0)),        # keyT
                pl.BlockSpec((1, HW4, 1), lambda b, q: (b, 0, 0)),        # kbias
                pl.BlockSpec((1, C2 + 1, HW4), lambda b, q: (b, 0, 0)),   # gT | 1
                pl.BlockSpec((C, C2), lambda b, q: (0, 0)),               # w_o^T
                pl.BlockSpec((C, 1), lambda b, q: (0, 0)),                # b_o
            ],
            out_specs=pl.BlockSpec((1, C, block_q), lambda b, q: (b, 0, q)),
        ),
        compiler_params=pltpu.CompilerParams(
            dimension_semantics=("parallel", "parallel"),
            vmem_limit_bytes=vmem_limit,
        ),
        cost_estimate=cost,
    )(gamma.reshape(1, 1).astype(jnp.float32),
      x_flat,
      keyT.astype(cdt),
      kbias.astype(jnp.float32),
      g_ext.astype(cdt),
      jnp.transpose(w_o).astype(cdt),
      b_o.reshape(C, 1).astype(jnp.float32))

    return out_flat.reshape(B, C, H, W)


def self_attention_reference(x, params):
    """Pure-JAX reference mirroring the PyTorch forward (NCHW)."""
    w_t, b_t, w_p, b_p, w_g, b_g, w_o, b_o, gamma = params
    B, C, H, W = x.shape

    def conv1x1(y, w, b):
        return jnp.einsum('bchw,cd->bdhw', y, w) + b.reshape(1, -1, 1, 1)

    def maxpool2(y):
        return lax.reduce_window(y, -jnp.inf, lax.max,
                                 (1, 1, 2, 2), (1, 1, 2, 2), 'VALID')

    theta = conv1x1(x, w_t, b_t).reshape(B, -1, H * W).transpose(0, 2, 1)
    phi = maxpool2(conv1x1(x, w_p, b_p)).reshape(B, -1, H * W // 4)
    attn = jax.nn.softmax(jnp.matmul(theta, phi), axis=-1)
    g = maxpool2(conv1x1(x, w_g, b_g)).reshape(B, -1, H * W // 4)
    o = jnp.matmul(g, jnp.transpose(attn, (0, 2, 1))).reshape(B, -1, H, W)
    o = conv1x1(o, w_o, b_o)
    return gamma.reshape(()) * o + x


if __name__ == "__main__":
    B, C, H, W = 2, 16, 16, 16          # in_channels=16 -> C/8=2, C/2=8
    C8, C2 = C // 8, C // 2

    key = jax.random.PRNGKey(0)
    ks = jax.random.split(key, 9)
    # deterministic parameter init (shapes from the module's __init__;
    # weights stored as (C_in, C_out), i.e. torch conv weight[:, :, 0, 0].T)
    w_t = 0.1 * jax.random.normal(ks[0], (C, C8), jnp.float32)
    b_t = 0.1 * jax.random.normal(ks[1], (C8,), jnp.float32)
    w_p = 0.1 * jax.random.normal(ks[2], (C, C8), jnp.float32)
    b_p = 0.1 * jax.random.normal(ks[3], (C8,), jnp.float32)
    w_g = 0.1 * jax.random.normal(ks[4], (C, C2), jnp.float32)
    b_g = 0.1 * jax.random.normal(ks[5], (C2,), jnp.float32)
    w_o = 0.1 * jax.random.normal(ks[6], (C2, C), jnp.float32)
    b_o = 0.1 * jax.random.normal(ks[7], (C,), jnp.float32)
    # torch inits gamma to 0 (output == x); use a nonzero value so the full
    # attention path is actually exercised numerically.
    gamma = jnp.array([0.5], jnp.float32)
    params = (w_t, b_t, w_p, b_p, w_g, b_g, w_o, b_o, gamma)

    x = jax.random.normal(ks[8], (B, C, H, W), jnp.float32)

    ref = jax.block_until_ready(self_attention_reference(x, params))

    # f32 MXU path (block_q=128 -> 2 query tiles per batch, exercises tiling)
    out = jax.block_until_ready(
        self_attention_pallas(x, params, block_q=128,
                              compute_dtype=jnp.float32))
    assert out.shape == (B, C, H, W)
    err = float(jnp.max(jnp.abs(out - ref)))
    # tolerance accounts for the approximate (EUP) reciprocal in the softmax
    assert jnp.allclose(out, ref, atol=2e-3, rtol=2e-3), err

    # bf16 MXU-operand + bf16-exp path (v6e/v7x optimization); accumulation,
    # softmax stats and the residual stay f32.
    out_bf16 = jax.block_until_ready(
        self_attention_pallas(x, params, block_q=128,
                              compute_dtype=jnp.bfloat16))
    err_bf16 = float(jnp.max(jnp.abs(out_bf16 - ref)))
    assert jnp.allclose(out_bf16, ref, atol=1e-1, rtol=1e-1), err_bf16

    print("KERNEL_OK")
</pallas_src>

<mosaic_0001>
module attributes {stable_mosaic.version = 11 : i64} {
  func.func @kernel(%arg0: i32, %arg1: i32, %arg2: memref<1x1xf32, #tpu.memory_space<smem>>, %arg3: memref<1x16x128xf32, #tpu.memory_space<vmem>>, %arg4: memref<1x64x16xf32, #tpu.memory_space<vmem>>, %arg5: memref<1x64x1xf32, #tpu.memory_space<vmem>>, %arg6: memref<1x9x64xf32, #tpu.memory_space<vmem>>, %arg7: memref<16x8xf32, #tpu.memory_space<vmem>>, %arg8: memref<16x1xf32, #tpu.memory_space<vmem>>, %arg9: memref<1x16x128xf32, #tpu.memory_space<vmem>>) attributes {dimension_semantics = [#tpu.dimension_semantics<parallel>, #tpu.dimension_semantics<parallel>], iteration_bounds = array<i64: 2, 2>, scalar_prefetch = 0 : i64, scratch_operands = 0 : i64, tpu.core_type = #tpu.core_type<tc>, window_params = [{transform_indices = @transform_0, window_bounds = array<i64: 1, 1>}, {transform_indices = @transform_1, window_bounds = array<i64: 1, 16, 128>}, {transform_indices = @transform_2, window_bounds = array<i64: 1, 64, 16>}, {transform_indices = @transform_3, window_bounds = array<i64: 1, 64, 1>}, {transform_indices = @transform_4, window_bounds = array<i64: 1, 9, 64>}, {pipeline_mode = #tpu.pipeline_mode<synchronous>, transform_indices = @transform_5, window_bounds = array<i64: 16, 8>}, {pipeline_mode = #tpu.pipeline_mode<synchronous>, transform_indices = @transform_6, window_bounds = array<i64: 16, 1>}, {transform_indices = @transform_7, window_bounds = array<i64: 1, 16, 128>}]} {
    %c0 = arith.constant 0 : index
    %c0_0 = arith.constant 0 : index
    %c0_1 = arith.constant 0 : index
    %0 = vector.load %arg3[%c0, %c0_0, %c0_1] : memref<1x16x128xf32, #tpu.memory_space<vmem>>, vector<1x16x128xf32>
    %1 = vector.shape_cast %0 : vector<1x16x128xf32> to vector<16x128xf32>
    %c0_2 = arith.constant 0 : index
    %c0_3 = arith.constant 0 : index
    %c0_4 = arith.constant 0 : index
    %2 = vector.load %arg4[%c0_2, %c0_3, %c0_4] : memref<1x64x16xf32, #tpu.memory_space<vmem>>, vector<1x64x16xf32>
    %3 = vector.shape_cast %2 : vector<1x64x16xf32> to vector<64x16xf32>
    %cst = arith.constant dense<0.000000e+00> : vector<64x128xf32>
    %4 = tpu.matmul %3, %1, %cst {dimension_numbers = #tpu.dot_dimension_numbers<[1], [0], [0], [1], [0, 0, 1, 1], [], []>} : vector<64x16xf32>, vector<16x128xf32>, vector<64x128xf32> -> vector<64x128xf32>
    %c0_5 = arith.constant 0 : index
    %c0_6 = arith.constant 0 : index
    %c0_7 = arith.constant 0 : index
    %5 = vector.load %arg5[%c0_5, %c0_6, %c0_7] : memref<1x64x1xf32, #tpu.memory_space<vmem>>, vector<1x64x1xf32>
    %6 = vector.shape_cast %5 : vector<1x64x1xf32> to vector<64x1xf32>
    %7 = vector.broadcast %6 : vector<64x1xf32> to vector<64x128xf32>
    %8 = arith.addf %4, %7 : vector<64x128xf32>
    %cst_8 = arith.constant dense<0xFF800000> : vector<128xf32>
    %9 = vector.multi_reduction <maximumf>, %8, %cst_8 [0] : vector<64x128xf32> to vector<128xf32>
    %10 = vector.shape_cast %9 : vector<128xf32> to vector<1x128xf32>
    %11 = vector.broadcast %10 : vector<1x128xf32> to vector<64x128xf32>
    %12 = arith.subf %8, %11 : vector<64x128xf32>
    %13 = math.exp %12 : vector<64x128xf32>
    %c0_9 = arith.constant 0 : index
    %c0_10 = arith.constant 0 : index
    %c0_11 = arith.constant 0 : index
    %14 = vector.load %arg6[%c0_9, %c0_10, %c0_11] : memref<1x9x64xf32, #tpu.memory_space<vmem>>, vector<1x9x64xf32>
    %15 = vector.shape_cast %14 : vector<1x9x64xf32> to vector<9x64xf32>
    %cst_12 = arith.constant dense<0.000000e+00> : vector<9x128xf32>
    %16 = tpu.matmul %15, %13, %cst_12 {dimension_numbers = #tpu.dot_dimension_numbers<[1], [0], [0], [1], [0, 0, 1, 1], [], []>} : vector<9x64xf32>, vector<64x128xf32>, vector<9x128xf32> -> vector<9x128xf32>
    %17 = vector.extract_strided_slice %16 {offsets = [0, 0], sizes = [8, 128], strides = [1, 1]} : vector<9x128xf32> to vector<8x128xf32>
    %18 = vector.extract_strided_slice %16 {offsets = [8, 0], sizes = [1, 128], strides = [1, 1]} : vector<9x128xf32> to vector<1x128xf32>
    %19 = tpu.reciprocal %18 {approx = true} : vector<1x128xf32> -> vector<1x128xf32>
    %20 = vector.broadcast %19 : vector<1x128xf32> to vector<8x128xf32>
    %21 = arith.mulf %17, %20 : vector<8x128xf32>
    %c0_13 = arith.constant 0 : index
    %c0_14 = arith.constant 0 : index
    %22 = vector.load %arg7[%c0_13, %c0_14] : memref<16x8xf32, #tpu.memory_space<vmem>>, vector<16x8xf32>
    %cst_15 = arith.constant dense<0.000000e+00> : vector<16x128xf32>
    %23 = tpu.matmul %22, %21, %cst_15 {dimension_numbers = #tpu.dot_dimension_numbers<[1], [0], [0], [1], [0, 0, 1, 1], [], []>} : vector<16x8xf32>, vector<8x128xf32>, vector<16x128xf32> -> vector<16x128xf32>
    %c0_16 = arith.constant 0 : index
    %c0_17 = arith.constant 0 : index
    %24 = vector.load %arg8[%c0_16, %c0_17] : memref<16x1xf32, #tpu.memory_space<vmem>>, vector<16x1xf32>
    %25 = vector.broadcast %24 : vector<16x1xf32> to vector<16x128xf32>
    %26 = arith.addf %23, %25 : vector<16x128xf32>
    %c0_18 = arith.constant 0 : index
    %c0_19 = arith.constant 0 : index
    %27 = memref.load %arg2[%c0_18, %c0_19] : memref<1x1xf32, #tpu.memory_space<smem>>
    %28 = vector.broadcast %27 : f32 to vector<16x128xf32>
    %29 = arith.mulf %28, %26 : vector<16x128xf32>
    %30 = arith.addf %29, %1 : vector<16x128xf32>
    %c0_20 = arith.constant 0 : index
    %c0_21 = arith.constant 0 : index
    %c0_22 = arith.constant 0 : index
    %31 = vector.load %arg9[%c0_20, %c0_21, %c0_22] : memref<1x16x128xf32, #tpu.memory_space<vmem>>, vector<1x16x128xf32>
    %32 = vector.shape_cast %31 : vector<1x16x128xf32> to vector<16x128xf32>
    %33 = vector.shape_cast %30 : vector<16x128xf32> to vector<1x16x128xf32>
    tpu.vector_store %arg9[%c0_20, %c0_21, %c0_22], %33 {strides = array<i32>} : memref<1x16x128xf32, #tpu.memory_space<vmem>>, vector<1x16x128xf32>,
    return
  }
  func.func @transform_0(%arg0: i32, %arg1: i32) -> (i32, i32) {
    %c0_i32 = arith.constant 0 : i32
    %c0_i32_0 = arith.constant 0 : i32
    %c0_i32_1 = arith.constant 0 : i32
    return %c0_i32, %c0_i32_0 : i32, i32
  }
  func.func @transform_1(%arg0: i32, %arg1: i32) -> (i32, i32, i32) {
    %c0_i32 = arith.constant 0 : i32
    %c0_i32_0 = arith.constant 0 : i32
    return %arg0, %c0_i32, %arg1 : i32, i32, i32
  }
  func.func @transform_2(%arg0: i32, %arg1: i32) -> (i32, i32, i32) {
    %c0_i32 = arith.constant 0 : i32
    %c0_i32_0 = arith.constant 0 : i32
    %c0_i32_1 = arith.constant 0 : i32
    return %arg0, %c0_i32, %c0_i32_0 : i32, i32, i32
  }
  func.func @transform_3(%arg0: i32, %arg1: i32) -> (i32, i32, i32) {
    %c0_i32 = arith.constant 0 : i32
    %c0_i32_0 = arith.constant 0 : i32
    %c0_i32_1 = arith.constant 0 : i32
    return %arg0, %c0_i32, %c0_i32_0 : i32, i32, i32
  }
  func.func @transform_4(%arg0: i32, %arg1: i32) -> (i32, i32, i32) {
    %c0_i32 = arith.constant 0 : i32
    %c0_i32_0 = arith.constant 0 : i32
    %c0_i32_1 = arith.constant 0 : i32
    return %arg0, %c0_i32, %c0_i32_0 : i32, i32, i32
  }
  func.func @transform_5(%arg0: i32, %arg1: i32) -> (i32, i32) {
    %c0_i32 = arith.constant 0 : i32
    %c0_i32_0 = arith.constant 0 : i32
    %c0_i32_1 = arith.constant 0 : i32
    return %c0_i32, %c0_i32_0 : i32, i32
  }
  func.func @transform_6(%arg0: i32, %arg1: i32) -> (i32, i32) {
    %c0_i32 = arith.constant 0 : i32
    %c0_i32_0 = arith.constant 0 : i32
    %c0_i32_1 = arith.constant 0 : i32
    return %c0_i32, %c0_i32_0 : i32, i32
  }
  func.func @transform_7(%arg0: i32, %arg1: i32) -> (i32, i32, i32) {
    %c0_i32 = arith.constant 0 : i32
    %c0_i32_0 = arith.constant 0 : i32
    return %arg0, %c0_i32, %arg1 : i32, i32, i32
  }
}

</mosaic_0001>

<llo_original>
// kernel: tpu_custom_call.1
$region0: #{tpu_custom_call.1}
  #allocation0 [shape = 'u32[]', space=smem, size = 0x4, offset = 0x4, fixed_abs, tag = 'smem constant byte address 0x4 - core index']
  #allocation1 [shape = 'u32[72,128]{1,0:T(1,128)}', space=vmem, size = 0x9000, scoped, tag = 'internal scratch']
  #allocation2 [shape = 'f32[1,1]{1,0:T(1,128)S(6)}', space=smem, size = 0x200, scoped, tag = 'scoped memory for tpu_custom_call.1']
  %s0 = inlined_call_operand.<no memory space> [shape: f32[1,1], index: 0, kind: input, shape index: {}]
  %s1 = inlined_call_operand.vmem [shape: f32[2,16,256], index: 1, kind: input, shape index: {}]
  %s2 = inlined_call_operand.vmem [shape: f32[2,64,16], index: 2, kind: input, shape index: {}]
  %s3 = inlined_call_operand.vmem [shape: f32[2,64,1], index: 3, kind: input, shape index: {}]
  %s4 = inlined_call_operand.vmem [shape: f32[2,9,64], index: 4, kind: input, shape index: {}]
  %s5 = inlined_call_operand.vmem [shape: f32[16,8], index: 5, kind: input, shape index: {}]
  %s6 = inlined_call_operand.vmem [shape: f32[16,1], index: 6, kind: input, shape index: {}]
  %s7 = inlined_call_operand.hbm [shape: f32[2,16,256], index: 7, kind: output, shape index: {}]
  %s8 = sld [smem:[#allocation0]]
  $region99: #{tpu_custom_call.1} parent=0
    _
  %s10 = ssub.s32 1, %s8
  %s11 = scalar_select 0, %s10, %s8
  %12 = sst [smem:[#allocation2]] %s0
  $region1: #{tpu_custom_call.1} parent=0
    #allocation3 [shape = 'u8[16384]{0}', space=vmem, size = 0x4000, scoped, tag = 'input window, operand 1']
    #allocation4 [shape = 'u8[16384]{0}', space=vmem, size = 0x4000, scoped, tag = 'output window, operand 0']
    #allocation5 [shape = 's32[2]{0}', space=sflag, size = 0x8, scoped, tag = 'scoped memory for tpu_custom_call.1']
    %13 = vsyncpa [#allocation5], 0
    %s14 = scalar_lea.sflag [#allocation5], 1
    %15 = vsyncpa %s14, 0
    loop: start=0, step=1, limit=6
    $region2: #{tpu_custom_call.1} parent=1 // loop_pre_header
      _
    $region3: #{tpu_custom_call.1} parent=1 // loop_header
      %s17 = sphi 0, %s21
      %p18 = scmp.ge.s32.totalorder %s17, 6
      %s24 = sphi 0, %s36
      %s25 = sphi 0, %s32
      %s26 = sphi 0, %s24
      %s27 = sphi 0, %s25
      %s28 = sphi 0, %s26
      %s29 = sphi 0, %s27
      %s37 = sphi 0, %s37
      %s39 = sphi 0, %s37
      %s40 = sphi 0, %s39
      %s54 = sphi 0, %s40
      %s62 = sphi 0, %s64
      %s65 = sphi 0, %s62
      %s66 = sphi 0, %s65
      %s82 = sphi 0, %s66
      %s88 = sphi 0, %s90
      %s91 = sphi 0, %s88
      %s92 = sphi 0, %s91
      %s108 = sphi 0, %s92
      %s114 = sphi 0, %s116
      %s117 = sphi 0, %s114
      %s118 = sphi 0, %s117
      %s134 = sphi 0, %s118
      %s140 = sphi 0, %s142
      %s143 = sphi 0, %s140
      %s144 = sphi 0, %s143
      %s160 = sphi 0, %s144
      %s164 = sphi 0, %s164
      %s166 = sphi 0, %s164
      %s167 = sphi 0, %s166
      %s181 = sphi 0, %s167
      %s185 = sphi 0, %s185
      %s187 = sphi 0, %s185
      %s188 = sphi 0, %s187
      %s202 = sphi 0, %s188
      %s210 = sphi 0, %s212
      %s213 = sphi 0, %s210
      %s214 = sphi 0, %s213
      %s230 = sphi 0, %s214
    $region4: #{tpu_custom_call.1} parent=1 // loop_header_branch
      %20 = sbr.rel (%p18) target = $region8
    $region5: #{tpu_custom_call.1} parent=1 // loop_body
      %s22 = ssub.s32 %s17, 1
      %s23 = ssub.s32 %s17, 2
      %s30 = sadd.s32 1, %s25
      %p31 = scmp.ge.s32.totalorder %s30, 2
      %s32 = scalar_select %p31, 0, %s30
      %s33 = sadd.s32 1, %s24
      %s34 = scalar_select %p31, %s33, %s24
      %p35 = scmp.ge.s32.totalorder %s34, 2
      %s36 = scalar_select %p35, 0, %s34
      %s38 = sadd.s32 %s37, 1
      %p41 = scmp.eq.s32.totalorder %s17, 3
      %p42 = scmp.ne.s32.totalorder %s37, %s39
      %p43 = scmp.eq.s32.totalorder %s17, 0
      %p44 = por %p42, %p43
      %p45 = scmp.ne.s32.totalorder %s37, %s39
      %p46 = scmp.eq.s32.totalorder %s22, 3
      %p47 = por %p45, %p46
      %p48 = scmp.ne.s32.totalorder %s39, %s40
      %p49 = scmp.eq.s32.totalorder %s22, 0
      %p50 = por %p48, %p49
      %p51 = scmp.ne.s32.totalorder %s39, %s40
      %p52 = scmp.eq.s32.totalorder %s23, 3
      %p53 = por %p51, %p52
      %p55 = scmp.ne.s32.totalorder %s40, %s54
      %p56 = scmp.eq.s32.totalorder %s23, 0
      %p57 = por %p55, %p56
      %s58 = ssub.s32 %s24, %s36
      %s59 = ssub.s32 %s25, %s32
      %s60 = sor.u32 %s58, %s59
      %p61 = scmp.eq.s32.totalorder %s60, 0
      %s63 = sadd.s32 %s62, 1
      %s64 = scalar_select %p61, %s62, %s63
      %p67 = pneg %p61
      %p68 = scmp.eq.s32.totalorder %s17, 3
      %p69 = por %p67, %p68
      %p70 = scmp.ne.s32.totalorder %s62, %s65
      %p71 = scmp.eq.s32.totalorder %s17, 0
      %p72 = por %p70, %p71
      %p73 = scmp.ne.s32.totalorder %s62, %s65
      %p74 = scmp.eq.s32.totalorder %s22, 3
      %p75 = por %p73, %p74
      %p76 = scmp.ne.s32.totalorder %s65, %s66
      %p77 = scmp.eq.s32.totalorder %s22, 0
      %p78 = por %p76, %p77
      %p79 = scmp.ne.s32.totalorder %s65, %s66
      %p80 = scmp.eq.s32.totalorder %s23, 3
      %p81 = por %p79, %p80
      %p83 = scmp.ne.s32.totalorder %s66, %s82
      %p84 = scmp.eq.s32.totalorder %s23, 0
      %p85 = por %p83, %p84
      %s86 = ssub.s32 %s24, %s36
      %p87 = scmp.eq.s32.totalorder %s86, 0
      %s89 = sadd.s32 %s88, 1
      %s90 = scalar_select %p87, %s88, %s89
      %p93 = pneg %p87
      %p94 = scmp.eq.s32.totalorder %s17, 3
      %p95 = por %p93, %p94
      %p96 = scmp.ne.s32.totalorder %s88, %s91
      %p97 = scmp.eq.s32.totalorder %s17, 0
      %p98 = por %p96, %p97
      %p99 = scmp.ne.s32.totalorder %s88, %s91
      %p100 = scmp.eq.s32.totalorder %s22, 3
      %p101 = por %p99, %p100
      %p102 = scmp.ne.s32.totalorder %s91, %s92
      %p103 = scmp.eq.s32.totalorder %s22, 0
      %p104 = por %p102, %p103
      %p105 = scmp.ne.s32.totalorder %s91, %s92
      %p106 = scmp.eq.s32.totalorder %s23, 3
      %p107 = por %p105, %p106
      %p109 = scmp.ne.s32.totalorder %s92, %s108
      %p110 = scmp.eq.s32.totalorder %s23, 0
      %p111 = por %p109, %p110
      %s112 = ssub.s32 %s24, %s36
      %p113 = scmp.eq.s32.totalorder %s112, 0
      %s115 = sadd.s32 %s114, 1
      %s116 = scalar_select %p113, %s114, %s115
      %p119 = pneg %p113
      %p120 = scmp.eq.s32.totalorder %s17, 3
      %p121 = por %p119, %p120
      %p122 = scmp.ne.s32.totalorder %s114, %s117
      %p123 = scmp.eq.s32.totalorder %s17, 0
      %p124 = por %p122, %p123
      %p125 = scmp.ne.s32.totalorder %s114, %s117
      %p126 = scmp.eq.s32.totalorder %s22, 3
      %p127 = por %p125, %p126
      %p128 = scmp.ne.s32.totalorder %s117, %s118
      %p129 = scmp.eq.s32.totalorder %s22, 0
      %p130 = por %p128, %p129
      %p131 = scmp.ne.s32.totalorder %s117, %s118
      %p132 = scmp.eq.s32.totalorder %s23, 3
      %p133 = por %p131, %p132
      %p135 = scmp.ne.s32.totalorder %s118, %s134
      %p136 = scmp.eq.s32.totalorder %s23, 0
      %p137 = por %p135, %p136
      %s138 = ssub.s32 %s24, %s36
      %p139 = scmp.eq.s32.totalorder %s138, 0
      %s141 = sadd.s32 %s140, 1
      %s142 = scalar_select %p139, %s140, %s141
      %p145 = pneg %p139
      %p146 = scmp.eq.s32.totalorder %s17, 3
      %p147 = por %p145, %p146
      %p148 = scmp.ne.s32.totalorder %s140, %s143
      %p149 = scmp.eq.s32.totalorder %s17, 0
      %p150 = por %p148, %p149
      %p151 = scmp.ne.s32.totalorder %s140, %s143
      %p152 = scmp.eq.s32.totalorder %s22, 3
      %p153 = por %p151, %p152
      %p154 = scmp.ne.s32.totalorder %s143, %s144
      %p155 = scmp.eq.s32.totalorder %s22, 0
      %p156 = por %p154, %p155
      %p157 = scmp.ne.s32.totalorder %s143, %s144
      %p158 = scmp.eq.s32.totalorder %s23, 3
      %p159 = por %p157, %p158
      %p161 = scmp.ne.s32.totalorder %s144, %s160
      %p162 = scmp.eq.s32.totalorder %s23, 0
      %p163 = por %p161, %p162
      %s165 = sadd.s32 %s164, 1
      %p168 = scmp.eq.s32.totalorder %s17, 3
      %p169 = scmp.ne.s32.totalorder %s164, %s166
      %p170 = scmp.eq.s32.totalorder %s17, 0
      %p171 = por %p169, %p170
      %p172 = scmp.ne.s32.totalorder %s164, %s166
      %p173 = scmp.eq.s32.totalorder %s22, 3
      %p174 = por %p172, %p173
      %p175 = scmp.ne.s32.totalorder %s166, %s167
      %p176 = scmp.eq.s32.totalorder %s22, 0
      %p177 = por %p175, %p176
      %p178 = scmp.ne.s32.totalorder %s166, %s167
      %p179 = scmp.eq.s32.totalorder %s23, 3
      %p180 = por %p178, %p179
      %p182 = scmp.ne.s32.totalorder %s167, %s181
      %p183 = scmp.eq.s32.totalorder %s23, 0
      %p184 = por %p182, %p183
      %s186 = sadd.s32 %s185, 1
      %p189 = scmp.eq.s32.totalorder %s17, 3
      %p190 = scmp.ne.s32.totalorder %s185, %s187
      %p191 = scmp.eq.s32.totalorder %s17, 0
      %p192 = por %p190, %p191
      %p193 = scmp.ne.s32.totalorder %s185, %s187
      %p194 = scmp.eq.s32.totalorder %s22, 3
      %p195 = por %p193, %p194
      %p196 = scmp.ne.s32.totalorder %s187, %s188
      %p197 = scmp.eq.s32.totalorder %s22, 0
      %p198 = por %p196, %p197
      %p199 = scmp.ne.s32.totalorder %s187, %s188
      %p200 = scmp.eq.s32.totalorder %s23, 3
      %p201 = por %p199, %p200
      %p203 = scmp.ne.s32.totalorder %s188, %s202
      %p204 = scmp.eq.s32.totalorder %s23, 0
      %p205 = por %p203, %p204
      %s206 = ssub.s32 %s24, %s36
      %s207 = ssub.s32 %s25, %s32
      %s208 = sor.u32 %s206, %s207
      %p209 = scmp.eq.s32.totalorder %s208, 0
      %s211 = sadd.s32 %s210, 1
      %s212 = scalar_select %p209, %s210, %s211
      %p215 = pneg %p209
      %p216 = scmp.eq.s32.totalorder %s17, 3
      %p217 = por %p215, %p216
      %p218 = scmp.ne.s32.totalorder %s210, %s213
      %p219 = scmp.eq.s32.totalorder %s17, 0
      %p220 = por %p218, %p219
      %p221 = scmp.ne.s32.totalorder %s210, %s213
      %p222 = scmp.eq.s32.totalorder %s22, 3
      %p223 = por %p221, %p222
      %p224 = scmp.ne.s32.totalorder %s213, %s214
      %p225 = scmp.eq.s32.totalorder %s22, 0
      %p226 = por %p224, %p225
      %p227 = scmp.ne.s32.totalorder %s213, %s214
      %p228 = scmp.eq.s32.totalorder %s23, 3
      %p229 = por %p227, %p228
      %p231 = scmp.ne.s32.totalorder %s214, %s230
      %p232 = scmp.eq.s32.totalorder %s23, 0
      %p233 = por %p231, %p232
      %p234 = scmp.le.s32.totalorder 1, %s17
      %p235 = scmp.lt.s32.totalorder %s17, 5
      %p236 = pnand %p234, %p235
      %p237 = pneg %p236
      // Predicated region
      $region9: #{tpu_custom_call.1} parent=5 // pred_check
        _
      $region10: #{tpu_custom_call.1} parent=5 // pred_check_branch
        %239 = sbr.rel (%p236) target = $region12
      $region11: #{tpu_custom_call.1} parent=5 // pred_region
        %s240 = ssub.s32 %s17, 1
        // Predicated region
        $region13: #{tpu_custom_call.1} parent=11 // pred_check
          %p241 = pneg %p50
        $region14: #{tpu_custom_call.1} parent=11 // pred_check_branch
          %243 = sbr.rel (%p241) target = $region16
        $region15: #{tpu_custom_call.1} parent=11 // pred_region
          _
        $region16: #{tpu_custom_call.1} parent=11 // pred_fallthru
          _
        // Predicated region
        $region17: #{tpu_custom_call.1} parent=11 // pred_check
          %p244 = pneg %p177
        $region18: #{tpu_custom_call.1} parent=11 // pred_check_branch
          %246 = sbr.rel (%p244) target = $region20
        $region19: #{tpu_custom_call.1} parent=11 // pred_region
          _
        $region20: #{tpu_custom_call.1} parent=11 // pred_fallthru
          _
        // Predicated region
        $region21: #{tpu_custom_call.1} parent=11 // pred_check
          %p247 = pneg %p198
        $region22: #{tpu_custom_call.1} parent=11 // pred_check_branch
          %249 = sbr.rel (%p247) target = $region24
        $region23: #{tpu_custom_call.1} parent=11 // pred_region
          _
        $region24: #{tpu_custom_call.1} parent=11 // pred_fallthru
          _
      $region12: #{tpu_custom_call.1} parent=5 // pred_fallthru
        _
      %p250 = scmp.lt.s32.totalorder %s17, 4
      // Predicated region
      $region25: #{tpu_custom_call.1} parent=5 // pred_check
        %p251 = pneg %p250
      $region26: #{tpu_custom_call.1} parent=5 // pred_check_branch
        %253 = sbr.rel (%p251) target = $region28
      $region27: #{tpu_custom_call.1} parent=5 // pred_region
        // Predicated region
        $region29: #{tpu_custom_call.1} parent=27 // pred_check
          %p254 = pneg %p72
        $region30: #{tpu_custom_call.1} parent=27 // pred_check_branch
          %256 = sbr.rel (%p254) target = $region32
        $region31: #{tpu_custom_call.1} parent=27 // pred_region
          %s257 = sand.u32 %s62, 1
          %s258 = sand.u32 %s62, 1
          %s259 = smul.addr %s258, 16
          %s260 = scalar_lea.vmem [#allocation3], %s259
          %s261 = smul.addr %s24, 4
          %s262 = sadd.s32 %s25, %s261
          %s263 = smul.addr %s262, 8
          %s264 = scalar_lea.vmem %s1, %s263
          // Predicated region
          $region33: #{tpu_custom_call.1} parent=31 // pred_check
            _
          $region34: #{tpu_custom_call.1} parent=31 // pred_check_branch
            %266 = sbr.rel (0) target = $region36
          $region35: #{tpu_custom_call.1} parent=31 // pred_region
            // Predicated region
            $region37: #{tpu_custom_call.1} parent=35 // pred_check
              _
            $region38: #{tpu_custom_call.1} parent=35 // pred_check_branch
              %268 = sbr.rel (0) target = $region40
            $region39: #{tpu_custom_call.1} parent=35 // pred_region
              // Predicated region
              $region52: #{tpu_custom_call.1} parent=39 // pred_check
                _
              $region53: #{tpu_custom_call.1} parent=39 // pred_check_branch
                %286 = sbr.rel (0) target = $region55
              $region54: #{tpu_custom_call.1} parent=39 // pred_region
                loop: start=0, step=1, limit=1
                $region56: #{tpu_custom_call.1} parent=54 // loop_pre_header
                  _
                $region57: #{tpu_custom_call.1} parent=54 // loop_header
                  %s288 = sphi 0, %s292
                  %p289 = scmp.ge.s32.totalorder %s288, 1
                  %s293 = sphi %s264, %s264
                  %s294 = sphi %s260, %s260
                $region58: #{tpu_custom_call.1} parent=54 // loop_header_branch
                  %291 = sbr.rel (%p289) target = $region62
                $region59: #{tpu_custom_call.1} parent=54 // loop_body
                  %v295 = vld [vmem:[%s293] sm:$0xff]
                  %296 = vst [vmem:[%s294] sm:$0xff] %v295
                  %v297 = vld [vmem:[%s293 + $0x10] sm:$0xff]
                  %298 = vst [vmem:[%s294 + $0x8] sm:$0xff] %v297
                $region60: #{tpu_custom_call.1} parent=54 // loop_footer
                  %s292 = sadd.s32 1, %s288
                $region61: #{tpu_custom_call.1} parent=54 // loop_footer_branch
                  %287 = sbr.rel target = $region57
                $region62: #{tpu_custom_call.1} parent=54 // loop_exit
                  _
              $region55: #{tpu_custom_call.1} parent=39 // pred_fallthru
                _
              // Predicated region
              $region63: #{tpu_custom_call.1} parent=39 // pred_check
                _
              $region64: #{tpu_custom_call.1} parent=39 // pred_check_branch
                %300 = sbr.rel target = $region66
              $region65: #{tpu_custom_call.1} parent=39 // pred_region
                _
              $region66: #{tpu_custom_call.1} parent=39 // pred_fallthru
                _
            $region40: #{tpu_custom_call.1} parent=35 // pred_fallthru
              _
            // Predicated region
            $region41: #{tpu_custom_call.1} parent=35 // pred_check
              _
            $region42: #{tpu_custom_call.1} parent=35 // pred_check_branch
              %270 = sbr.rel target = $region44
            $region43: #{tpu_custom_call.1} parent=35 // pred_region
              %s272 = ssub.s32 256, 1
              loop: start=0, step=1, limit=1
              $region45: #{tpu_custom_call.1} parent=43 // loop_pre_header
                _
              $region46: #{tpu_custom_call.1} parent=43 // loop_header
                %s274 = sphi 0, %s278
                %p275 = scmp.ge.s32.totalorder %s274, 1
                %s279 = sphi %s264, %s264
                %s280 = sphi %s260, %s260
              $region47: #{tpu_custom_call.1} parent=43 // loop_header_branch
                %277 = sbr.rel (%p275) target = $region51
              $region48: #{tpu_custom_call.1} parent=43 // loop_body
                %v281 = vld [vmem:[%s279] sm:%s272]
                %282 = vst [vmem:[%s280] sm:%s272] %v281
                %v283 = vld [vmem:[%s279 + $0x10] sm:%s272]
                %284 = vst [vmem:[%s280 + $0x8] sm:%s272] %v283
              $region49: #{tpu_custom_call.1} parent=43 // loop_footer
                %s278 = sadd.s32 1, %s274
              $region50: #{tpu_custom_call.1} parent=43 // loop_footer_branch
                %273 = sbr.rel target = $region46
              $region51: #{tpu_custom_call.1} parent=43 // loop_exit
                _
            $region44: #{tpu_custom_call.1} parent=35 // pred_fallthru
              _
          $region36: #{tpu_custom_call.1} parent=31 // pred_fallthru
            _
          %301 = vnop
        $region32: #{tpu_custom_call.1} parent=27 // pred_fallthru
          _
        // Predicated region
        $region67: #{tpu_custom_call.1} parent=27 // pred_check
          %p302 = pneg %p98
        $region68: #{tpu_custom_call.1} parent=27 // pred_check_branch
          %304 = sbr.rel (%p302) target = $region70
        $region69: #{tpu_custom_call.1} parent=27 // pred_region
          %p305 = scmp.lt.s32.totalorder %s24, 1
          %s306 = scalar_select %p305, %s24, 1
          %s307 = smul.addr %s306, 8
          %s308 = smul.addr %s307, 8
          %s309 = scalar_lea.vmem %s2, %s308
        $region70: #{tpu_custom_call.1} parent=27 // pred_fallthru
          _
        // Predicated region
        $region71: #{tpu_custom_call.1} parent=27 // pred_check
          %p310 = pneg %p124
        $region72: #{tpu_custom_call.1} parent=27 // pred_check_branch
          %312 = sbr.rel (%p310) target = $region74
        $region73: #{tpu_custom_call.1} parent=27 // pred_region
          %p313 = scmp.lt.s32.totalorder %s24, 1
          %s314 = scalar_select %p313, %s24, 1
          %s315 = smul.addr %s314, 8
          %s316 = smul.addr %s315, 8
          %s317 = scalar_lea.vmem %s3, %s316
        $region74: #{tpu_custom_call.1} parent=27 // pred_fallthru
          _
        // Predicated region
        $region75: #{tpu_custom_call.1} parent=27 // pred_check
          %p318 = pneg %p150
        $region76: #{tpu_custom_call.1} parent=27 // pred_check_branch
          %320 = sbr.rel (%p318) target = $region78
        $region77: #{tpu_custom_call.1} parent=27 // pred_region
          %p321 = scmp.lt.s32.totalorder %s24, 1
          %s322 = scalar_select %p321, %s24, 1
          %s323 = smul.addr %s322, 2
          %s324 = smul.addr %s323, 8
          %s325 = scalar_lea.vmem %s4, %s324
        $region78: #{tpu_custom_call.1} parent=27 // pred_fallthru
          _
      $region28: #{tpu_custom_call.1} parent=5 // pred_fallthru
        _
      %p326 = scmp.le.s32.totalorder 1, %s17
      %p327 = scmp.lt.s32.totalorder %s17, 5
      %p328 = pnand %p326, %p327
      %p329 = pneg %p328
      // Predicated region
      $region79: #{tpu_custom_call.1} parent=5 // pred_check
        _
      $region80: #{tpu_custom_call.1} parent=5 // pred_check_branch
        %331 = sbr.rel (%p328) target = $region82
      $region81: #{tpu_custom_call.1} parent=5 // pred_region
        %s332 = ssub.s32 %s17, 1
        %s333 = sand.u32 %s65, 1
        %s334 = sand.u32 %s65, 1
        %s335 = smul.addr %s334, 16
        %s336 = scalar_lea.vmem [#allocation3], %s335
        // Predicated region
        $region83: #{tpu_custom_call.1} parent=81 // pred_check
          %p337 = pneg %p78
        $region84: #{tpu_custom_call.1} parent=81 // pred_check_branch
          %339 = sbr.rel (%p337) target = $region86
        $region85: #{tpu_custom_call.1} parent=81 // pred_region
          _
        $region86: #{tpu_custom_call.1} parent=81 // pred_fallthru
          _
        %p340 = pneg %p50
        %p341 = pneg %p47
        %s342 = sand.u32 %s65, 1
        %s343 = sand.u32 %s65, 1
        %s344 = smul.addr %s343, 16
        %s345 = scalar_lea.vmem [#allocation3], %s344
        %p346 = pneg %p78
        %p347 = pneg %p75
        %p348 = scmp.lt.s32.totalorder %s26, 1
        %s349 = scalar_select %p348, %s26, 1
        %s350 = smul.addr %s349, 8
        %s351 = smul.addr %s350, 8
        %s352 = scalar_lea.vmem %s2, %s351
        %p353 = pneg %p104
        %p354 = pneg %p101
        %p355 = scmp.lt.s32.totalorder %s26, 1
        %s356 = scalar_select %p355, %s26, 1
        %s357 = smul.addr %s356, 8
        %s358 = smul.addr %s357, 8
        %s359 = scalar_lea.vmem %s3, %s358
        %p360 = pneg %p130
        %p361 = pneg %p127
        %p362 = scmp.lt.s32.totalorder %s26, 1
        %s363 = scalar_select %p362, %s26, 1
        %s364 = smul.addr %s363, 2
        %s365 = smul.addr %s364, 8
        %s366 = scalar_lea.vmem %s4, %s365
        %p367 = pneg %p156
        %p368 = pneg %p153
        %p369 = pneg %p177
        %p370 = pneg %p174
        %p371 = pneg %p198
        %p372 = pneg %p195
        %p373 = pneg %p226
        %p374 = pneg %p223
        %s375 = sand.u32 %s213, 1
        %s376 = scalar_lea.sflag [#allocation5], %s375
        %s377 = sand.u32 %s213, 1
        %s378 = smul.addr %s377, 16
        %s379 = scalar_lea.vmem [#allocation4], %s378
        %p380 = scmp.lt.s32.totalorder %s26, 1
        %s381 = scalar_select %p380, %s26, 1
        %s382 = smul.addr %s381, 8
        %s383 = smul.addr %s382, 8
        %s384 = scalar_lea.vmem %s2, %s383
        %p385 = scmp.lt.s32.totalorder %s26, 1
        %s386 = scalar_select %p385, %s26, 1
        %s387 = smul.addr %s386, 8
        %s388 = smul.addr %s387, 8
        %s389 = scalar_lea.vmem %s3, %s388
        %p390 = scmp.lt.s32.totalorder %s26, 1
        %s391 = scalar_select %p390, %s26, 1
        %s392 = smul.addr %s391, 2
        %s393 = smul.addr %s392, 8
        %s394 = scalar_lea.vmem %s4, %s393
        %v395 = vld [vmem:[%s336] sm:$0xff]
        %v396 = vld [vmem:[%s336 + $0x8] sm:$0xff]
        %v397 = vld [vmem:[%s384] sm:$0xff]
        %v398 = vld [vmem:[%s384 + $0x8] sm:$0xff]
        %v399 = vld [vmem:[%s384 + $0x10] sm:$0xff]
        %v400 = vld [vmem:[%s384 + $0x18] sm:$0xff]
        %v401 = vld [vmem:[%s384 + $0x20] sm:$0xff]
        %v402 = vld [vmem:[%s384 + $0x28] sm:$0xff]
        %v403 = vld [vmem:[%s384 + $0x30] sm:$0xff]
        %v404 = vld [vmem:[%s384 + $0x38] sm:$0xff]
        %v405 = vld [vmem:[%s389] sm:$0xff]
        %v406 = vld [vmem:[%s389 + $0x8] sm:$0xff]
        %v407 = vld [vmem:[%s389 + $0x10] sm:$0xff]
        %v408 = vld [vmem:[%s389 + $0x18] sm:$0xff]
        %v409 = vld [vmem:[%s389 + $0x20] sm:$0xff]
        %v410 = vld [vmem:[%s389 + $0x28] sm:$0xff]
        %v411 = vld [vmem:[%s389 + $0x30] sm:$0xff]
        %v412 = vld [vmem:[%s389 + $0x38] sm:$0xff]
        %414 = vset.pattern.permute.xlu0 0
        %415 = vperm.xlu0 %414, %v405
        %v416 = vpop.permute.xlu0 %415
        %419 = vset.pattern.permute.xlu0 0
        %420 = vperm.xlu0 %419, %v406
        %v421 = vpop.permute.xlu0 %420
        %424 = vset.pattern.permute.xlu0 0
        %425 = vperm.xlu0 %424, %v407
        %v426 = vpop.permute.xlu0 %425
        %429 = vset.pattern.permute.xlu0 0
        %430 = vperm.xlu0 %429, %v408
        %v431 = vpop.permute.xlu0 %430
        %434 = vset.pattern.permute.xlu0 0
        %435 = vperm.xlu0 %434, %v409
        %v436 = vpop.permute.xlu0 %435
        %439 = vset.pattern.permute.xlu0 0
        %440 = vperm.xlu0 %439, %v410
        %v441 = vpop.permute.xlu0 %440
        %444 = vset.pattern.permute.xlu0 0
        %445 = vperm.xlu0 %444, %v411
        %v446 = vpop.permute.xlu0 %445
        %449 = vset.pattern.permute.xlu0 0
        %450 = vperm.xlu0 %449, %v412
        %v451 = vpop.permute.xlu0 %450
        %vm453 = vcmask 130048
        %v455 = vsel %vm453, %v397, 0
        %v458 = vsel %vm453, %v398, 0
        %v461 = vsel %vm453, %v399, 0
        %v464 = vsel %vm453, %v400, 0
        %v467 = vsel %vm453, %v401, 0
        %v470 = vsel %vm453, %v402, 0
        %v473 = vsel %vm453, %v403, 0
        %v476 = vsel %vm453, %v404, 0
        %478 = vmatpush.msra.mxu0 0.0
        %479 = vmatpush.msra.mxu0 0.0
        %480 = vmatpush.msra.mxu0 0.0
        %481 = vmatpush.msra.mxu0 0.0
        %482 = vmatpush.msra.mxu0 0.0
        %483 = vmatpush.msra.mxu0 0.0
        %484 = vmatpush.msra.mxu0 0.0
        %485 = vmatpush.msra.mxu0 0.0
        %486 = vmatpush.msra.mxu0 0.0
        %487 = vmatpush.msra.mxu0 0.0
        %488 = vmatpush.msra.mxu0 0.0
        %489 = vmatpush.msra.mxu0 0.0
        %490 = vmatpush.msra.mxu0 0.0
        %491 = vmatpush.msra.mxu0 0.0
        %492 = vmatpush.msra.mxu0 %v396
        %493 = vmatpush.msra.mxu0 %v395
        %494 = vmatmul.f32.gmra.mxu0 %v455
        %v495 = vpop.f32.mrf.mxu0
        %v496 = vadd.f32 %v416, %v495
        %497 = vmatmul.f32.gmra.mxu0 %v458
        %v498 = vpop.f32.mrf.mxu0
        %v499 = vadd.f32 %v421, %v498
        %500 = vmatmul.f32.gmra.mxu0 %v461
        %v501 = vpop.f32.mrf.mxu0
        %v502 = vadd.f32 %v426, %v501
        %503 = vmatmul.f32.gmra.mxu0 %v464
        %v504 = vpop.f32.mrf.mxu0
        %v505 = vadd.f32 %v431, %v504
        %506 = vmatmul.f32.gmra.mxu0 %v467
        %v507 = vpop.f32.mrf.mxu0
        %v508 = vadd.f32 %v436, %v507
        %509 = vmatmul.f32.gmra.mxu0 %v470
        %v510 = vpop.f32.mrf.mxu0
        %v511 = vadd.f32 %v441, %v510
        %512 = vmatmul.f32.gmra.mxu0 %v473
        %v513 = vpop.f32.mrf.mxu0
        %v514 = vadd.f32 %v446, %v513
        %515 = vmatmul.f32.gmra.mxu0 %v476
        %v516 = vpop.f32.mrf.mxu0
        %v517 = vadd.f32 %v451, %v516
        %518 = vdwg.mxu0
        %v519 = vmax.f32 %v496, %v508
        %v520 = vmax.f32 %v499, %v511
        %v521 = vmax.f32 %v502, %v514
        %v522 = vmax.f32 %v505, %v517
        %v523 = vmax.f32 %v519, %v520
        %v524 = vmax.f32 %v521, %v522
        %v525 = vmax.f32 %v523, %v524
        %v526 = vrot.slane %v525, 4
        %v527 = vmax.f32 %v525, %v526
        %v528 = vrot.slane %v527, 2
        %v529 = vmax.f32 %v527, %v528
        %v530 = vrot.slane %v529, 1
        %v531 = vmax.f32 %v529, %v530
        %v532 = vsub.f32 %v496, %v531
        %v533 = vsub.f32 %v499, %v531
        %v534 = vsub.f32 %v502, %v531
        %v535 = vsub.f32 %v505, %v531
        %v536 = vsub.f32 %v508, %v531
        %v537 = vsub.f32 %v511, %v531
        %v538 = vsub.f32 %v514, %v531
        %v539 = vsub.f32 %v517, %v531
        %v540 = vmul.f32 %v532, 1.442695
        %v541 = vpow.pop %v540
        %v542 = vmul.f32 %v533, 1.442695
        %v543 = vpow.pop %v542
        %v544 = vmul.f32 %v534, 1.442695
        %v545 = vpow.pop %v544
        %v546 = vmul.f32 %v535, 1.442695
        %v547 = vpow.pop %v546
        %v548 = vmul.f32 %v536, 1.442695
        %v549 = vpow.pop %v548
        %v550 = vmul.f32 %v537, 1.442695
        %v551 = vpow.pop %v550
        %v552 = vmul.f32 %v538, 1.442695
        %v553 = vpow.pop %v552
        %v554 = vmul.f32 %v539, 1.442695
        %v555 = vpow.pop %v554
        %v556 = vld [vmem:[%s394] sm:$0xff]
        %v557 = vld [vmem:[%s394 + $0x8] sm:$0x1]
        %vm558 = vcmask 523264
        %v560 = vsel %vm558, %v556, 0
        %v563 = vsel %vm558, %v557, 0
        %565 = vmatpush.msra.mxu0 0.0
        %566 = vmatpush.msra.mxu0 0.0
        %567 = vmatpush.msra.mxu0 0.0
        %568 = vmatpush.msra.mxu0 0.0
        %569 = vmatpush.msra.mxu0 0.0
        %570 = vmatpush.msra.mxu0 0.0
        %571 = vmatpush.msra.mxu0 0.0
        %572 = vmatpush.msra.mxu0 0.0
        %573 = vmatpush.msra.mxu0 %v555
        %574 = vmatpush.msra.mxu0 %v553
        %575 = vmatpush.msra.mxu0 %v551
        %576 = vmatpush.msra.mxu0 %v549
        %577 = vmatpush.msra.mxu0 %v547
        %578 = vmatpush.msra.mxu0 %v545
        %579 = vmatpush.msra.mxu0 %v543
        %580 = vmatpush.msra.mxu0 %v541
        %581 = vmatmul.f32.gmra.mxu0 %v560
        %v582 = vpop.f32.mrf.mxu0
        %v583 = vadd.f32 0.0, %v582
        %584 = vmatmul.f32.gmra.mxu0 %v563
        %v585 = vpop.f32.mrf.mxu0
        %v586 = vadd.f32 0.0, %v585
        %587 = vdwg.mxu0
        %v588 = vrcp.pop %v586
        %v589 = vperm.slane %v588, 0
        %v590 = vmul.f32 %v583, %v589
        %v591 = vld [vmem:[%s5] sm:$0xff]
        %v592 = vld [vmem:[%s5 + $0x8] sm:$0xff]
        %v593 = vld [vmem:[%s6] sm:$0xff]
        %v594 = vld [vmem:[%s6 + $0x8] sm:$0xff]
        %596 = vset.pattern.permute.xlu0 0
        %597 = vperm.xlu0 %596, %v593
        %v598 = vpop.permute.xlu0 %597
        %601 = vset.pattern.permute.xlu0 0
        %602 = vperm.xlu0 %601, %v594
        %v603 = vpop.permute.xlu0 %602
        %vm605 = vcmask 64512
        %v607 = vsel %vm605, %v591, 0
        %v610 = vsel %vm605, %v592, 0
        %612 = vmatpush.msra.mxu0 0.0
        %613 = vmatpush.msra.mxu0 0.0
        %614 = vmatpush.msra.mxu0 0.0
        %615 = vmatpush.msra.mxu0 0.0
        %616 = vmatpush.msra.mxu0 0.0
        %617 = vmatpush.msra.mxu0 0.0
        %618 = vmatpush.msra.mxu0 0.0
        %619 = vmatpush.msra.mxu0 0.0
        %620 = vmatpush.msra.mxu0 0.0
        %621 = vmatpush.msra.mxu0 0.0
        %622 = vmatpush.msra.mxu0 0.0
        %623 = vmatpush.msra.mxu0 0.0
        %624 = vmatpush.msra.mxu0 0.0
        %625 = vmatpush.msra.mxu0 0.0
        %626 = vmatpush.msra.mxu0 0.0
        %627 = vmatpush.msra.mxu0 %v590
        %628 = vmatmul.f32.gmra.mxu0 %v607
        %v629 = vpop.f32.mrf.mxu0
        %v630 = vadd.f32 %v598, %v629
        %631 = vmatmul.f32.gmra.mxu0 %v610
        %v632 = vpop.f32.mrf.mxu0
        %v633 = vadd.f32 %v603, %v632
        %634 = vdwg.mxu0
        %s635 = sld [smem:[#allocation2]]
        %v636 = vstv %s635
        %v637 = vmul.f32 %v636, %v630
        %v638 = vmul.f32 %v636, %v633
        %v639 = vadd.f32 %v637, %v395
        %v640 = vadd.f32 %v638, %v396
        %641 = vst [vmem:[%s379] sm:$0xff] %v639
        %642 = vst [vmem:[%s379 + $0x8] sm:$0xff] %v640
        %s643 = sand.u32 %s213, 1
        %s644 = scalar_lea.sflag [#allocation5], %s643
        %s645 = sand.u32 %s213, 1
        %s646 = smul.addr %s645, 16
        %s647 = scalar_lea.vmem [#allocation4], %s646
        // Predicated region
        $region87: #{tpu_custom_call.1} parent=81 // pred_check
          %p648 = pneg %p223
        $region88: #{tpu_custom_call.1} parent=81 // pred_check_branch
          %650 = sbr.rel (%p648) target = $region90
        $region89: #{tpu_custom_call.1} parent=81 // pred_region
          %652 = vsyncadd %s644, 0
          %s653 = smul.addr %s26, 4
          %s654 = sadd.s32 %s27, %s653
          %s655 = smul.addr %s654, 8
          %s656 = scalar_lea.hbm %s7, %s655
          %s657 = sshll.u32 %s647, 4
          %s658 = int_to_ptr.vmem [resolvable:$true] %s657
          %s659 = sshll.u32 %s656, 4
          %s660 = int_to_ptr.hbm [resolvable:$true] %s659
          %665 = dma.vmem_to_hbm [thread:$0]  %s658, 256, %s660, %s644, 128, 256, 8
        $region90: #{tpu_custom_call.1} parent=81 // pred_fallthru
          _
      $region82: #{tpu_custom_call.1} parent=5 // pred_fallthru
        _
      %p666 = scmp.le.s32.totalorder 2, %s17
      // Predicated region
      $region91: #{tpu_custom_call.1} parent=5 // pred_check
        %p667 = pneg %p666
      $region92: #{tpu_custom_call.1} parent=5 // pred_check_branch
        %669 = sbr.rel (%p667) target = $region94
      $region93: #{tpu_custom_call.1} parent=5 // pred_region
        %s670 = ssub.s32 %s17, 2
        // Predicated region
        $region95: #{tpu_custom_call.1} parent=93 // pred_check
          %p671 = pneg %p229
        $region96: #{tpu_custom_call.1} parent=93 // pred_check_branch
          %673 = sbr.rel (%p671) target = $region98
        $region97: #{tpu_custom_call.1} parent=93 // pred_region
          %s674 = sand.u32 %s214, 1
          %s675 = scalar_lea.sflag [#allocation5], %s674
          %s676 = sand.u32 %s214, 1
          %s677 = smul.addr %s676, 16
          %s678 = scalar_lea.vmem [#allocation4], %s677
          %680 = dma.done %s675, 256
        $region98: #{tpu_custom_call.1} parent=93 // pred_fallthru
          _
      $region94: #{tpu_custom_call.1} parent=5 // pred_fallthru
        _
    $region6: #{tpu_custom_call.1} parent=1 // loop_footer
      %s21 = sadd.s32 1, %s17
    $region7: #{tpu_custom_call.1} parent=1 // loop_footer_branch
      %16 = sbr.rel target = $region3
    $region8: #{tpu_custom_call.1} parent=1 // loop_exit
      _
    %681 = vsyncpa [#allocation5], 1
    %s682 = scalar_lea.sflag [#allocation5], 1
    %683 = vsyncpa %s682, 1

</llo_original>
